<compile_context>
chip_gen: v6e
topology: v6e:2x2x1
jax: 0.10.0
libtpu: 0.0.40
codegen_flags: <defaults>
</compile_context>

<pallas_src>
import jax
import jax.numpy as jnp
from jax.experimental import pallas as pl
from jax.experimental.pallas import tpu as pltpu

IN_DIM, H1, H2, OUT_DIM = 54, 256, 128, 13
OUT_PAD = 128          # lane-dense width used *inside* the kernel for fc3
NEG_INF = -1e30        # padded-logit bias -> exp() underflows to exactly 0 in f32


def _round_up(n, m):
    return ((n + m - 1) // m) * m


def _choose_tile(B, block_b):
    """Batch tile: multiple of 16, big enough to amortize grid-step overhead,
    and >=2 grid steps for medium batches so both v7x TCs get work."""
    B = max(B, 1)
    if B <= block_b:
        if B >= 512:
            return _round_up((B + 1) // 2, 16)   # two tiles -> two TCs
        return _round_up(B, 16)                  # tiny batch: one tile
    return block_b


def mlp_softmax_kernel(x_ref, w1_ref, b1_ref, w2_ref, b2_ref, w3_ref, b3_ref,
                       o_ref):
    # x tile: (TB, 54) f32, cast to bf16 in-kernel (hidden under DMA/MXU).
    x = x_ref[...].astype(jnp.bfloat16)

    # fc1 + ReLU  (f32 accumulation on the MXU)
    h1 = jnp.dot(x, w1_ref[...], preferred_element_type=jnp.float32)
    h1 = jnp.maximum(h1 + b1_ref[...], 0.0).astype(jnp.bfloat16)

    # fc2 + ReLU
    h2 = jnp.dot(h1, w2_ref[...], preferred_element_type=jnp.float32)
    h2 = jnp.maximum(h2 + b2_ref[...], 0.0).astype(jnp.bfloat16)

    # fc3 logits on a lane-dense 128-wide padded weight; padded columns carry
    # bias = -1e30 so exp() == 0 and they never affect the softmax.
    logits = jnp.dot(h2, w3_ref[...], preferred_element_type=jnp.float32)
    logits = logits + b3_ref[...]

    # numerically stable softmax (exact divide; VPU has huge slack here)
    m = jnp.max(logits, axis=1, keepdims=True)
    e = jnp.exp(logits - m)
    s = jnp.sum(e, axis=1, keepdims=True)
    probs = e / s

    # Store only the 13 real classes -> (TB, 13) f32, 52 B/row.
    o_ref[...] = probs[:, :OUT_DIM].astype(o_ref.dtype)


def prepare_params(w1, b1, w2, b2, w3, b3):
    """One-time parameter preprocessing (hoisted out of the forward pass)."""
    w1b = w1.astype(jnp.bfloat16)
    w2b = w2.astype(jnp.bfloat16)
    b1f = b1.reshape(1, H1).astype(jnp.float32)
    b2f = b2.reshape(1, H2).astype(jnp.float32)
    w3p = jnp.zeros((H2, OUT_PAD), jnp.bfloat16).at[:, :OUT_DIM].set(
        w3.astype(jnp.bfloat16))
    b3p = jnp.full((1, OUT_PAD), NEG_INF, jnp.float32).at[:, :OUT_DIM].set(
        b3.reshape(1, OUT_DIM).astype(jnp.float32))
    return w1b, b1f, w2b, b2f, w3p, b3p


def rubiks_cube_forward(x, prepared, *, block_b=4096):
    """x: any leading shape, flattened to (-1, 54) like torch's x.view(-1, 54).

    `prepared` is the output of prepare_params(). Returns (B, 13) f32 softmax."""
    w1b, b1f, w2b, b2f, w3p, b3p = prepared

    x2d = x.reshape(-1, IN_DIM).astype(jnp.float32)
    B = x2d.shape[0]

    TB = _choose_tile(B, block_b)
    B_pad = _round_up(B, TB)
    if B_pad != B:
        x2d = jnp.pad(x2d, ((0, B_pad - B), (0, 0)))

    grid = (B_pad // TB,)
    const = lambda shape: pl.BlockSpec(shape, lambda i: (0, 0))  # VMEM-resident

    # Scoped-VMEM request: actual per-tile footprint * 1.5, capped at 48 MiB.
    per_row = (IN_DIM * (4 * 2 + 2)     # f32 x (double-buffered) + bf16 copy
               + H1 * (4 + 2)           # h1 f32 + bf16
               + H2 * (4 + 2)           # h2 f32 + bf16
               + OUT_PAD * 4 * 3        # logits / exp / probs (f32)
               + OUT_DIM * 4 * 2)       # f32 out tile (double-buffered)
    vmem_est = TB * per_row + (1 << 20)  # + params / slack
    vmem_limit = min(48 << 20, max(int(1.5 * vmem_est), 16 << 20))

    out = pl.pallas_call(
        mlp_softmax_kernel,
        out_shape=jax.ShapeDtypeStruct((B_pad, OUT_DIM), jnp.float32),
        grid=grid,
        in_specs=[
            pl.BlockSpec((TB, IN_DIM), lambda i: (i, 0)),   # streamed f32 x
            const((IN_DIM, H1)), const((1, H1)),
            const((H1, H2)),     const((1, H2)),
            const((H2, OUT_PAD)), const((1, OUT_PAD)),
        ],
        out_specs=pl.BlockSpec((TB, OUT_DIM), lambda i: (i, 0)),
        compiler_params=pltpu.CompilerParams(
            dimension_semantics=("parallel",),   # shard batch tiles across TCs
            vmem_limit_bytes=vmem_limit,
        ),
    )(x2d, w1b, b1f, w2b, b2f, w3p, b3p)

    return out if B_pad == B else out[:B]


def init_params(key):
    """Deterministic init mirroring nn.Linear default (uniform +/- 1/sqrt(fan_in)).

    Weights are stored [in, out] (transposed vs. PyTorch's [out, in])."""
    ks = jax.random.split(key, 6)

    def linear(kw, kb, fan_in, fan_out):
        bound = 1.0 / jnp.sqrt(fan_in)
        w = jax.random.uniform(kw, (fan_in, fan_out), jnp.float32, -bound, bound)
        b = jax.random.uniform(kb, (1, fan_out), jnp.float32, -bound, bound)
        return w, b

    w1, b1 = linear(ks[0], ks[1], IN_DIM, H1)
    w2, b2 = linear(ks[2], ks[3], H1, H2)
    w3, b3 = linear(ks[4], ks[5], H2, OUT_DIM)
    return w1, b1, w2, b2, w3, b3


def _reference(x, params):
    """Plain-JAX reference using the same bf16 matmul dtypes as the kernel."""
    w1, b1, w2, b2, w3, b3 = params
    xb = x.reshape(-1, IN_DIM).astype(jnp.bfloat16)
    h1 = jnp.maximum(
        jnp.dot(xb, w1.astype(jnp.bfloat16),
                preferred_element_type=jnp.float32) + b1, 0.0).astype(jnp.bfloat16)
    h2 = jnp.maximum(
        jnp.dot(h1, w2.astype(jnp.bfloat16),
                preferred_element_type=jnp.float32) + b2, 0.0).astype(jnp.bfloat16)
    logits = jnp.dot(h2, w3.astype(jnp.bfloat16),
                     preferred_element_type=jnp.float32) + b3
    return jax.nn.softmax(logits, axis=1)


if __name__ == "__main__":
    key = jax.random.PRNGKey(0)
    k_param, k_x1, k_x2 = jax.random.split(key, 3)

    params = init_params(k_param)
    prepared = prepare_params(*params)

    # Case 1: tiny batch of "cube states": 8 x 54 features (single grid step).
    B1 = 8
    x1 = jax.random.uniform(k_x1, (B1, IN_DIM), jnp.float32)
    out1 = jax.block_until_ready(rubiks_cube_forward(x1, prepared))
    assert out1.shape == (B1, OUT_DIM)
    assert jnp.allclose(jnp.sum(out1, axis=1), 1.0, atol=1e-4)
    assert jnp.allclose(out1, _reference(x1, params), atol=1e-3)

    # Case 2: non-multiple batch with a forced small tile -> exercises the
    # multi-step grid, streaming, padding and final row slice.
    B2 = 40
    x2 = jax.random.uniform(k_x2, (B2, IN_DIM), jnp.float32)
    out2 = jax.block_until_ready(rubiks_cube_forward(x2, prepared, block_b=16))
    assert out2.shape == (B2, OUT_DIM)
    assert jnp.allclose(jnp.sum(out2, axis=1), 1.0, atol=1e-4)
    assert jnp.allclose(out2, _reference(x2, params), atol=1e-3)

    print("KERNEL_OK")
</pallas_src>

<mosaic_0001>
module attributes {stable_mosaic.version = 11 : i64} {
  func.func @mlp_softmax_kernel(%arg0: i32, %arg1: memref<16x54xf32, #tpu.memory_space<vmem>>, %arg2: memref<54x256xbf16, #tpu.memory_space<vmem>>, %arg3: memref<1x256xf32, #tpu.memory_space<vmem>>, %arg4: memref<256x128xbf16, #tpu.memory_space<vmem>>, %arg5: memref<1x128xf32, #tpu.memory_space<vmem>>, %arg6: memref<128x128xbf16, #tpu.memory_space<vmem>>, %arg7: memref<1x128xf32, #tpu.memory_space<vmem>>, %arg8: memref<16x13xf32, #tpu.memory_space<vmem>>) attributes {dimension_semantics = [#tpu.dimension_semantics<parallel>], iteration_bounds = array<i64: 1>, scalar_prefetch = 0 : i64, scratch_operands = 0 : i64, tpu.core_type = #tpu.core_type<tc>, window_params = [{transform_indices = @transform_0, window_bounds = array<i64: 16, 54>}, {pipeline_mode = #tpu.pipeline_mode<synchronous>, transform_indices = @transform_1, window_bounds = array<i64: 54, 256>}, {pipeline_mode = #tpu.pipeline_mode<synchronous>, transform_indices = @transform_2, window_bounds = array<i64: 1, 256>}, {pipeline_mode = #tpu.pipeline_mode<synchronous>, transform_indices = @transform_3, window_bounds = array<i64: 256, 128>}, {pipeline_mode = #tpu.pipeline_mode<synchronous>, transform_indices = @transform_4, window_bounds = array<i64: 1, 128>}, {pipeline_mode = #tpu.pipeline_mode<synchronous>, transform_indices = @transform_5, window_bounds = array<i64: 128, 128>}, {pipeline_mode = #tpu.pipeline_mode<synchronous>, transform_indices = @transform_6, window_bounds = array<i64: 1, 128>}, {transform_indices = @transform_7, window_bounds = array<i64: 16, 13>}]} {
    %c0 = arith.constant 0 : index
    %c0_0 = arith.constant 0 : index
    %0 = vector.load %arg1[%c0, %c0_0] : memref<16x54xf32, #tpu.memory_space<vmem>>, vector<16x54xf32>
    %1 = arith.truncf %0 : vector<16x54xf32> to vector<16x54xbf16>
    %c0_1 = arith.constant 0 : index
    %c0_2 = arith.constant 0 : index
    %2 = vector.load %arg2[%c0_1, %c0_2] : memref<54x256xbf16, #tpu.memory_space<vmem>>, vector<54x256xbf16>
    %cst = arith.constant dense<0.000000e+00> : vector<16x256xf32>
    %3 = tpu.matmul %1, %2, %cst {dimension_numbers = #tpu.dot_dimension_numbers<[1], [0], [0], [1], [0, 0, 1, 1], [], []>} : vector<16x54xbf16>, vector<54x256xbf16>, vector<16x256xf32> -> vector<16x256xf32>
    %c0_3 = arith.constant 0 : index
    %c0_4 = arith.constant 0 : index
    %4 = vector.load %arg3[%c0_3, %c0_4] : memref<1x256xf32, #tpu.memory_space<vmem>>, vector<1x256xf32>
    %5 = vector.broadcast %4 : vector<1x256xf32> to vector<16x256xf32>
    %6 = arith.addf %3, %5 : vector<16x256xf32>
    %cst_5 = arith.constant 0.000000e+00 : f32
    %7 = vector.broadcast %cst_5 : f32 to vector<16x256xf32>
    %8 = arith.maximumf %6, %7 : vector<16x256xf32>
    %9 = arith.truncf %8 : vector<16x256xf32> to vector<16x256xbf16>
    %c0_6 = arith.constant 0 : index
    %c0_7 = arith.constant 0 : index
    %10 = vector.load %arg4[%c0_6, %c0_7] : memref<256x128xbf16, #tpu.memory_space<vmem>>, vector<256x128xbf16>
    %cst_8 = arith.constant dense<0.000000e+00> : vector<16x128xf32>
    %11 = tpu.matmul %9, %10, %cst_8 {dimension_numbers = #tpu.dot_dimension_numbers<[1], [0], [0], [1], [0, 0, 1, 1], [], []>} : vector<16x256xbf16>, vector<256x128xbf16>, vector<16x128xf32> -> vector<16x128xf32>
    %c0_9 = arith.constant 0 : index
    %c0_10 = arith.constant 0 : index
    %12 = vector.load %arg5[%c0_9, %c0_10] : memref<1x128xf32, #tpu.memory_space<vmem>>, vector<1x128xf32>
    %13 = vector.broadcast %12 : vector<1x128xf32> to vector<16x128xf32>
    %14 = arith.addf %11, %13 : vector<16x128xf32>
    %cst_11 = arith.constant 0.000000e+00 : f32
    %15 = vector.broadcast %cst_11 : f32 to vector<16x128xf32>
    %16 = arith.maximumf %14, %15 : vector<16x128xf32>
    %17 = arith.truncf %16 : vector<16x128xf32> to vector<16x128xbf16>
    %c0_12 = arith.constant 0 : index
    %c0_13 = arith.constant 0 : index
    %18 = vector.load %arg6[%c0_12, %c0_13] : memref<128x128xbf16, #tpu.memory_space<vmem>>, vector<128x128xbf16>
    %cst_14 = arith.constant dense<0.000000e+00> : vector<16x128xf32>
    %19 = tpu.matmul %17, %18, %cst_14 {dimension_numbers = #tpu.dot_dimension_numbers<[1], [0], [0], [1], [0, 0, 1, 1], [], []>} : vector<16x128xbf16>, vector<128x128xbf16>, vector<16x128xf32> -> vector<16x128xf32>
    %c0_15 = arith.constant 0 : index
    %c0_16 = arith.constant 0 : index
    %20 = vector.load %arg7[%c0_15, %c0_16] : memref<1x128xf32, #tpu.memory_space<vmem>>, vector<1x128xf32>
    %21 = vector.broadcast %20 : vector<1x128xf32> to vector<16x128xf32>
    %22 = arith.addf %19, %21 : vector<16x128xf32>
    %cst_17 = arith.constant dense<0xFF800000> : vector<16xf32>
    %23 = vector.multi_reduction <maximumf>, %22, %cst_17 [1] : vector<16x128xf32> to vector<16xf32>
    %24 = vector.shape_cast %23 : vector<16xf32> to vector<16x1xf32>
    %25 = vector.broadcast %24 : vector<16x1xf32> to vector<16x128xf32>
    %26 = arith.subf %22, %25 : vector<16x128xf32>
    %27 = math.exp %26 : vector<16x128xf32>
    %cst_18 = arith.constant dense<0.000000e+00> : vector<16xf32>
    %28 = vector.multi_reduction <add>, %27, %cst_18 [1] : vector<16x128xf32> to vector<16xf32>
    %29 = vector.shape_cast %28 : vector<16xf32> to vector<16x1xf32>
    %30 = vector.broadcast %29 : vector<16x1xf32> to vector<16x128xf32>
    %31 = arith.divf %27, %30 : vector<16x128xf32>
    %32 = vector.extract_strided_slice %31 {offsets = [0, 0], sizes = [16, 13], strides = [1, 1]} : vector<16x128xf32> to vector<16x13xf32>
    %c0_19 = arith.constant 0 : index
    %c0_20 = arith.constant 0 : index
    %33 = vector.load %arg8[%c0_19, %c0_20] : memref<16x13xf32, #tpu.memory_space<vmem>>, vector<16x13xf32>
    tpu.vector_store %arg8[%c0_19, %c0_20], %32 {strides = array<i32>} : memref<16x13xf32, #tpu.memory_space<vmem>>, vector<16x13xf32>,
    return
  }
  func.func @transform_0(%arg0: i32) -> (i32, i32) {
    %c0_i32 = arith.constant 0 : i32
    %c0_i32_0 = arith.constant 0 : i32
    return %arg0, %c0_i32 : i32, i32
  }
  func.func @transform_1(%arg0: i32) -> (i32, i32) {
    %c0_i32 = arith.constant 0 : i32
    %c0_i32_0 = arith.constant 0 : i32
    %c0_i32_1 = arith.constant 0 : i32
    return %c0_i32, %c0_i32_0 : i32, i32
  }
  func.func @transform_2(%arg0: i32) -> (i32, i32) {
    %c0_i32 = arith.constant 0 : i32
    %c0_i32_0 = arith.constant 0 : i32
    %c0_i32_1 = arith.constant 0 : i32
    return %c0_i32, %c0_i32_0 : i32, i32
  }
  func.func @transform_3(%arg0: i32) -> (i32, i32) {
    %c0_i32 = arith.constant 0 : i32
    %c0_i32_0 = arith.constant 0 : i32
    %c0_i32_1 = arith.constant 0 : i32
    return %c0_i32, %c0_i32_0 : i32, i32
  }
  func.func @transform_4(%arg0: i32) -> (i32, i32) {
    %c0_i32 = arith.constant 0 : i32
    %c0_i32_0 = arith.constant 0 : i32
    %c0_i32_1 = arith.constant 0 : i32
    return %c0_i32, %c0_i32_0 : i32, i32
  }
  func.func @transform_5(%arg0: i32) -> (i32, i32) {
    %c0_i32 = arith.constant 0 : i32
    %c0_i32_0 = arith.constant 0 : i32
    %c0_i32_1 = arith.constant 0 : i32
    return %c0_i32, %c0_i32_0 : i32, i32
  }
  func.func @transform_6(%arg0: i32) -> (i32, i32) {
    %c0_i32 = arith.constant 0 : i32
    %c0_i32_0 = arith.constant 0 : i32
    %c0_i32_1 = arith.constant 0 : i32
    return %c0_i32, %c0_i32_0 : i32, i32
  }
  func.func @transform_7(%arg0: i32) -> (i32, i32) {
    %c0_i32 = arith.constant 0 : i32
    %c0_i32_0 = arith.constant 0 : i32
    return %arg0, %c0_i32 : i32, i32
  }
}

</mosaic_0001>

<llo_original>
// kernel: tpu_custom_call.1
$region0: #{tpu_custom_call.1}
  #allocation0 [shape = 'u32[]', space=smem, size = 0x4, offset = 0x4, fixed_abs, tag = 'smem constant byte address 0x4 - core index']
  #allocation1 [shape = 'u32[144,128]{1,0:T(1,128)}', space=vmem, size = 0x12000, scoped, tag = 'internal scratch']
  %s0 = inlined_call_operand.hbm [shape: f32[16,54], index: 0, kind: input, shape index: {}]
  %s1 = inlined_call_operand.hbm [shape: bf16[54,256], index: 1, kind: input, shape index: {}]
  %s2 = inlined_call_operand.vmem [shape: f32[1,256], index: 2, kind: input, shape index: {}]
  %s3 = inlined_call_operand.hbm [shape: bf16[256,128], index: 3, kind: input, shape index: {}]
  %s4 = inlined_call_operand.vmem [shape: f32[1,128], index: 4, kind: input, shape index: {}]
  %s5 = inlined_call_operand.hbm [shape: bf16[128,128], index: 5, kind: input, shape index: {}]
  %s6 = inlined_call_operand.vmem [shape: f32[1,128], index: 6, kind: input, shape index: {}]
  %s7 = inlined_call_operand.hbm [shape: f32[16,13], index: 7, kind: output, shape index: {}]
  %s8 = sld [smem:[#allocation0]]
  $region54: #{tpu_custom_call.1} parent=0
    _
  %s10 = ssub.s32 1, %s8
  %s11 = scalar_select 0, %s10, %s8
  $region1: #{tpu_custom_call.1} parent=0
    #allocation2 [shape = 'u8[8192]{0}', space=vmem, size = 0x2000, scoped, tag = 'input window, operand 0, single buffered']
    #allocation3 [shape = 's32[1]{0}', space=sflag, size = 0x4, scoped, tag = 'scoped memory for tpu_custom_call.1']
    #allocation4 [shape = 's32[1]{0}', space=sflag, size = 0x4, scoped, tag = 'scoped memory for tpu_custom_call.1']
    #allocation5 [shape = 'u8[28672]{0}', space=vmem, size = 0x7000, scoped, tag = 'input window, operand 1, single buffered']
    #allocation6 [shape = 's32[1]{0}', space=sflag, size = 0x4, scoped, tag = 'scoped memory for tpu_custom_call.1']
    #allocation7 [shape = 'u8[65536]{0}', space=vmem, size = 0x10000, scoped, tag = 'input window, operand 3, single buffered']
    #allocation8 [shape = 'u8[32768]{0}', space=vmem, size = 0x8000, scoped, tag = 'input window, operand 5, single buffered']
    #allocation9 [shape = 's32[1]{0}', space=sflag, size = 0x4, scoped, tag = 'scoped memory for tpu_custom_call.1']
    #allocation10 [shape = 'u8[8192]{0}', space=vmem, size = 0x2000, scoped, tag = 'output window, operand 0, single buffered']
    %12 = vsyncpa [#allocation3], 0
    %13 = vsyncpa [#allocation6], 0
    %14 = vsyncpa [#allocation9], 0
    %15 = vsyncpa [#allocation4], 0
    // Predicated region
    $region2: #{tpu_custom_call.1} parent=1 // pred_check
      _
    $region3: #{tpu_custom_call.1} parent=1 // pred_check_branch
      %17 = sbr.rel (0) target = $region5
    $region4: #{tpu_custom_call.1} parent=1 // pred_region
      %s19 = ssub.s32 256, 256
      %20 = vsyncadd [#allocation3], %s19
      %s21 = sshll.u32 [#allocation2], 4
      %s22 = int_to_ptr.vmem [resolvable:$true] %s21
      %27 = dma.hbm_to_vmem [thread:$0]  %s0, 256, %s22, [#allocation3], 128, 128, 8
    $region5: #{tpu_custom_call.1} parent=1 // pred_fallthru
      _
    // Predicated region
    $region6: #{tpu_custom_call.1} parent=1 // pred_check
      _
    $region7: #{tpu_custom_call.1} parent=1 // pred_check_branch
      %29 = sbr.rel (0) target = $region9
    $region8: #{tpu_custom_call.1} parent=1 // pred_region
      %s31 = ssub.s32 896, 896
      %32 = vsyncadd [#allocation6], %s31
      %s33 = sshll.u32 [#allocation5], 4
      %s34 = int_to_ptr.vmem [resolvable:$true] %s33
      %39 = dma.hbm_to_vmem [thread:$0]  %s1, 896, %s34, [#allocation6], 128, 128, 8
    $region9: #{tpu_custom_call.1} parent=1 // pred_fallthru
      _
    // Predicated region
    $region10: #{tpu_custom_call.1} parent=1 // pred_check
      _
    $region11: #{tpu_custom_call.1} parent=1 // pred_check_branch
      %41 = sbr.rel (0) target = $region13
    $region12: #{tpu_custom_call.1} parent=1 // pred_region
      _
    $region13: #{tpu_custom_call.1} parent=1 // pred_fallthru
      _
    // Predicated region
    $region14: #{tpu_custom_call.1} parent=1 // pred_check
      _
    $region15: #{tpu_custom_call.1} parent=1 // pred_check_branch
      %43 = sbr.rel (0) target = $region17
    $region16: #{tpu_custom_call.1} parent=1 // pred_region
      %s45 = ssub.s32 2048, 2048
      %46 = vsyncadd [#allocation6], %s45
      %s47 = sshll.u32 [#allocation7], 4
      %s48 = int_to_ptr.vmem [resolvable:$true] %s47
      %53 = dma.hbm_to_vmem [thread:$0]  %s3, 2048, %s48, [#allocation6], 64, 64, 4
    $region17: #{tpu_custom_call.1} parent=1 // pred_fallthru
      _
    // Predicated region
    $region18: #{tpu_custom_call.1} parent=1 // pred_check
      _
    $region19: #{tpu_custom_call.1} parent=1 // pred_check_branch
      %55 = sbr.rel (0) target = $region21
    $region20: #{tpu_custom_call.1} parent=1 // pred_region
      _
    $region21: #{tpu_custom_call.1} parent=1 // pred_fallthru
      _
    // Predicated region
    $region22: #{tpu_custom_call.1} parent=1 // pred_check
      _
    $region23: #{tpu_custom_call.1} parent=1 // pred_check_branch
      %57 = sbr.rel (0) target = $region25
    $region24: #{tpu_custom_call.1} parent=1 // pred_region
      %s59 = ssub.s32 1024, 1024
      %60 = vsyncadd [#allocation9], %s59
      %s61 = sshll.u32 [#allocation8], 4
      %s62 = int_to_ptr.vmem [resolvable:$true] %s61
      %67 = dma.hbm_to_vmem [thread:$0]  %s5, 1024, %s62, [#allocation9], 64, 64, 4
    $region25: #{tpu_custom_call.1} parent=1 // pred_fallthru
      _
    // Predicated region
    $region26: #{tpu_custom_call.1} parent=1 // pred_check
      _
    $region27: #{tpu_custom_call.1} parent=1 // pred_check_branch
      %69 = sbr.rel (0) target = $region29
    $region28: #{tpu_custom_call.1} parent=1 // pred_region
      _
    $region29: #{tpu_custom_call.1} parent=1 // pred_fallthru
      _
    // Predicated region
    $region30: #{tpu_custom_call.1} parent=1 // pred_check
      _
    $region31: #{tpu_custom_call.1} parent=1 // pred_check_branch
      %71 = sbr.rel (0) target = $region33
    $region32: #{tpu_custom_call.1} parent=1 // pred_region
      %72 = dma.done [#allocation3], 256
    $region33: #{tpu_custom_call.1} parent=1 // pred_fallthru
      _
    // Predicated region
    $region34: #{tpu_custom_call.1} parent=1 // pred_check
      _
    $region35: #{tpu_custom_call.1} parent=1 // pred_check_branch
      %74 = sbr.rel (0) target = $region37
    $region36: #{tpu_custom_call.1} parent=1 // pred_region
      %75 = dma.done [#allocation6], 896
    $region37: #{tpu_custom_call.1} parent=1 // pred_fallthru
      _
    // Predicated region
    $region38: #{tpu_custom_call.1} parent=1 // pred_check
      _
    $region39: #{tpu_custom_call.1} parent=1 // pred_check_branch
      %77 = sbr.rel (0) target = $region41
    $region40: #{tpu_custom_call.1} parent=1 // pred_region
      %78 = dma.done [#allocation6], 2048
    $region41: #{tpu_custom_call.1} parent=1 // pred_fallthru
      _
    // Predicated region
    $region42: #{tpu_custom_call.1} parent=1 // pred_check
      _
    $region43: #{tpu_custom_call.1} parent=1 // pred_check_branch
      %80 = sbr.rel (0) target = $region45
    $region44: #{tpu_custom_call.1} parent=1 // pred_region
      %81 = dma.done [#allocation9], 1024
    $region45: #{tpu_custom_call.1} parent=1 // pred_fallthru
      _
    %v83 = vld [vmem:[#allocation2] sm:$0xff]
    %v84 = vld [vmem:[#allocation2 + $0x8] sm:$0xff]
    %v85 = vpack.c.bf16 %v84, %v83
    %v86 = vld [vmem:[#allocation5] sm:$0xff]
    %v87 = vld [vmem:[#allocation5 + $0x8] sm:$0xff]
    %v88 = vld [vmem:[#allocation5 + $0x10] sm:$0xff]
    %v89 = vld [vmem:[#allocation5 + $0x18] sm:$0xff]
    %v90 = vld [vmem:[#allocation5 + $0x20] sm:$0xff]
    %v91 = vld [vmem:[#allocation5 + $0x28] sm:$0xff]
    %v92 = vld [vmem:[#allocation5 + $0x30] sm:$0x77]
    %v93 = vld [vmem:[%s2] sm:$0x3]
    %v95 = vlaneseq
    %v96 = vshrl.u32 %v95, 7
    %v97 = vsub.s32 0, %v96
    %v98 = vrot.slane %v93, %v97
    %v99 = vlaneseq
    %v100 = vshrl.u32 %v99, 7
    %v101 = vsub.s32 1, %v100
    %v102 = vrot.slane %v93, %v101
    %v112 = vunpack.c.l.b16 %v86
    %v113 = vunpack.c.h.b16 %v86
    %v114 = vunpack.c.l.b16 %v87
    %v115 = vunpack.c.h.b16 %v87
    %v116 = vunpack.c.l.b16 %v88
    %v117 = vunpack.c.h.b16 %v88
    %v118 = vunpack.c.l.b16 %v89
    %v119 = vunpack.c.h.b16 %v89
    %v120 = vunpack.c.l.b16 %v90
    %v121 = vunpack.c.h.b16 %v90
    %v122 = vunpack.c.l.b16 %v91
    %v123 = vunpack.c.h.b16 %v91
    %v124 = vunpack.c.l.b16 %v92
    %v125 = vunpack.c.h.b16 %v92
    %v126 = vpack.c.b16 %v114, %v112
    %v127 = vpack.c.b16 %v115, %v113
    %v128 = vpack.c.b16 %v118, %v116
    %v129 = vpack.c.b16 %v119, %v117
    %v130 = vpack.c.b16 %v122, %v120
    %v131 = vpack.c.b16 %v123, %v121
    %v132 = vpack.c.b16 %v124, %v124
    %v133 = vpack.c.b16 %v125, %v125
    %vm140 = vcmask 441344
    %v142 = vsel %vm140, %v85, 0
    %vm144 = vcmask 1042432
    %v146 = vsel %vm144, %v132, 0
    %v149 = vsel %vm144, %v133, 0
    %151 = vmatprep.subr.bf16.mxu0 0
    %152 = vmatpush1.bf16.msra.mxu0 0
    %153 = vmatprep.subr.bf16.mxu0 0
    %154 = vmatpush1.bf16.msra.mxu0 0
    %155 = vmatprep.subr.bf16.mxu0 0
    %156 = vmatpush1.bf16.msra.mxu0 0
    %157 = vmatprep.subr.bf16.mxu0 0
    %158 = vmatpush1.bf16.msra.mxu0 0
    %159 = vmatprep.subr.bf16.mxu0 %v149
    %160 = vmatpush1.bf16.msra.mxu0 %v146
    %161 = vmatprep.subr.bf16.mxu0 %v131
    %162 = vmatpush1.bf16.msra.mxu0 %v130
    %163 = vmatprep.subr.bf16.mxu0 %v129
    %164 = vmatpush1.bf16.msra.mxu0 %v128
    %165 = vmatprep.subr.bf16.mxu0 %v127
    %166 = vmatpush1.bf16.msra.mxu0 %v126
    %167 = vmatprep.subr.bf16.mxu0 0
    %168 = vmatpush2.bf16.msra.mxu0 0
    %169 = vmatprep.subr.bf16.mxu0 0
    %170 = vmatpush2.bf16.msra.mxu0 0
    %171 = vmatprep.subr.bf16.mxu0 0
    %172 = vmatpush2.bf16.msra.mxu0 0
    %173 = vmatprep.subr.bf16.mxu0 0
    %174 = vmatpush2.bf16.msra.mxu0 0
    %175 = vmatprep.subr.bf16.mxu0 0
    %176 = vmatpush2.bf16.msra.mxu0 0
    %177 = vmatprep.subr.bf16.mxu0 0
    %178 = vmatpush2.bf16.msra.mxu0 0
    %179 = vmatprep.subr.bf16.mxu0 0
    %180 = vmatpush2.bf16.msra.mxu0 0
    %181 = vmatprep.subr.bf16.mxu0 0
    %182 = vmatpush2.bf16.msra.mxu0 0
    %183 = vmatprep.mubr.bf16.mxu0 0
    %184 = vmatmul.mubr.bf16.gmra.mxu0 %v142
    %v185 = vpop.f32.mrf.mxu0
    %v186 = vadd.f32 %v98, %v185
    %v187 = vpop.f32.mrf.mxu0
    %v188 = vadd.f32 %v102, %v187
    %v189 = vpop.f32.mrf.mxu0
    %v190 = vadd.f32 %v98, %v189
    %v191 = vpop.f32.mrf.mxu0
    %v192 = vadd.f32 %v102, %v191
    %193 = vdwg.mxu0
    %v194 = vmax.f32 %v186, 0.0
    %v195 = vmax.f32 %v188, 0.0
    %v196 = vmax.f32 %v190, 0.0
    %v197 = vmax.f32 %v192, 0.0
    %v198 = vpack.c.bf16 %v196, %v194
    %v199 = vpack.c.bf16 %v197, %v195
    %v200 = vld [vmem:[#allocation7] sm:$0xf]
    %v201 = vld [vmem:[#allocation7 + $0x4] sm:$0xf]
    %v202 = vld [vmem:[#allocation7 + $0x8] sm:$0xf]
    %v203 = vld [vmem:[#allocation7 + $0xc] sm:$0xf]
    %v204 = vld [vmem:[#allocation7 + $0x10] sm:$0xf]
    %v205 = vld [vmem:[#allocation7 + $0x14] sm:$0xf]
    %v206 = vld [vmem:[#allocation7 + $0x18] sm:$0xf]
    %v207 = vld [vmem:[#allocation7 + $0x1c] sm:$0xf]
    %v208 = vld [vmem:[#allocation7 + $0x20] sm:$0xf]
    %v209 = vld [vmem:[#allocation7 + $0x24] sm:$0xf]
    %v210 = vld [vmem:[#allocation7 + $0x28] sm:$0xf]
    %v211 = vld [vmem:[#allocation7 + $0x2c] sm:$0xf]
    %v212 = vld [vmem:[#allocation7 + $0x30] sm:$0xf]
    %v213 = vld [vmem:[#allocation7 + $0x34] sm:$0xf]
    %v214 = vld [vmem:[#allocation7 + $0x38] sm:$0xf]
    %v215 = vld [vmem:[#allocation7 + $0x3c] sm:$0xf]
    %v216 = vld [vmem:[#allocation7 + $0x40] sm:$0xf]
    %v217 = vld [vmem:[#allocation7 + $0x44] sm:$0xf]
    %v218 = vld [vmem:[#allocation7 + $0x48] sm:$0xf]
    %v219 = vld [vmem:[#allocation7 + $0x4c] sm:$0xf]
    %v220 = vld [vmem:[#allocation7 + $0x50] sm:$0xf]
    %v221 = vld [vmem:[#allocation7 + $0x54] sm:$0xf]
    %v222 = vld [vmem:[#allocation7 + $0x58] sm:$0xf]
    %v223 = vld [vmem:[#allocation7 + $0x5c] sm:$0xf]
    %v224 = vld [vmem:[#allocation7 + $0x60] sm:$0xf]
    %v225 = vld [vmem:[#allocation7 + $0x64] sm:$0xf]
    %v226 = vld [vmem:[#allocation7 + $0x68] sm:$0xf]
    %v227 = vld [vmem:[#allocation7 + $0x6c] sm:$0xf]
    %v228 = vld [vmem:[#allocation7 + $0x70] sm:$0xf]
    %v229 = vld [vmem:[#allocation7 + $0x74] sm:$0xf]
    %v230 = vld [vmem:[#allocation7 + $0x78] sm:$0xf]
    %v231 = vld [vmem:[#allocation7 + $0x7c] sm:$0xf]
    %v232 = vld [vmem:[%s4] sm:$0x1]
    %v234 = vlaneseq
    %v235 = vshrl.u32 %v234, 7
    %v236 = vsub.s32 0, %v235
    %v237 = vrot.slane %v232, %v236
    %v271 = vunpack.c.l.b16 %v200
    %v272 = vunpack.c.l.b16 %v201
    %v273 = vunpack.c.l.b16 %v202
    %v274 = vunpack.c.l.b16 %v203
    %v275 = vunpack.c.l.b16 %v204
    %v276 = vunpack.c.l.b16 %v205
    %v277 = vunpack.c.l.b16 %v206
    %v278 = vunpack.c.l.b16 %v207
    %v279 = vunpack.c.l.b16 %v208
    %v280 = vunpack.c.l.b16 %v209
    %v281 = vunpack.c.l.b16 %v210
    %v282 = vunpack.c.l.b16 %v211
    %v283 = vunpack.c.l.b16 %v212
    %v284 = vunpack.c.l.b16 %v213
    %v285 = vunpack.c.l.b16 %v214
    %v286 = vunpack.c.l.b16 %v215
    %v287 = vunpack.c.l.b16 %v216
    %v288 = vunpack.c.l.b16 %v217
    %v289 = vunpack.c.l.b16 %v218
    %v290 = vunpack.c.l.b16 %v219
    %v291 = vunpack.c.l.b16 %v220
    %v292 = vunpack.c.l.b16 %v221
    %v293 = vunpack.c.l.b16 %v222
    %v294 = vunpack.c.l.b16 %v223
    %v295 = vunpack.c.l.b16 %v224
    %v296 = vunpack.c.l.b16 %v225
    %v297 = vunpack.c.l.b16 %v226
    %v298 = vunpack.c.l.b16 %v227
    %v299 = vunpack.c.l.b16 %v228
    %v300 = vunpack.c.l.b16 %v229
    %v301 = vunpack.c.l.b16 %v230
    %v302 = vunpack.c.l.b16 %v231
    %v303 = vpack.c.b16 %v272, %v271
    %v304 = vpack.c.b16 %v274, %v273
    %v305 = vpack.c.b16 %v276, %v275
    %v306 = vpack.c.b16 %v278, %v277
    %v307 = vpack.c.b16 %v280, %v279
    %v308 = vpack.c.b16 %v282, %v281
    %v309 = vpack.c.b16 %v284, %v283
    %v310 = vpack.c.b16 %v286, %v285
    %v311 = vpack.c.b16 %v288, %v287
    %v312 = vpack.c.b16 %v290, %v289
    %v313 = vpack.c.b16 %v292, %v291
    %v314 = vpack.c.b16 %v294, %v293
    %v315 = vpack.c.b16 %v296, %v295
    %v316 = vpack.c.b16 %v298, %v297
    %v317 = vpack.c.b16 %v300, %v299
    %v318 = vpack.c.b16 %v302, %v301
    %335 = vmatprep.subr.bf16.mxu0 0
    %336 = vmatpush1.bf16.msra.mxu0 %v310
    %337 = vmatprep.subr.bf16.mxu0 0
    %338 = vmatpush1.bf16.msra.mxu0 %v309
    %339 = vmatprep.subr.bf16.mxu0 0
    %340 = vmatpush1.bf16.msra.mxu0 %v308
    %341 = vmatprep.subr.bf16.mxu0 0
    %342 = vmatpush1.bf16.msra.mxu0 %v307
    %343 = vmatprep.subr.bf16.mxu0 0
    %344 = vmatpush1.bf16.msra.mxu0 %v306
    %345 = vmatprep.subr.bf16.mxu0 0
    %346 = vmatpush1.bf16.msra.mxu0 %v305
    %347 = vmatprep.subr.bf16.mxu0 0
    %348 = vmatpush1.bf16.msra.mxu0 %v304
    %349 = vmatprep.subr.bf16.mxu0 0
    %350 = vmatpush1.bf16.msra.mxu0 %v303
    %351 = vmatprep.subr.bf16.mxu0 0
    %352 = vmatpush2.bf16.msra.mxu0 %v318
    %353 = vmatprep.subr.bf16.mxu0 0
    %354 = vmatpush2.bf16.msra.mxu0 %v317
    %355 = vmatprep.subr.bf16.mxu0 0
    %356 = vmatpush2.bf16.msra.mxu0 %v316
    %357 = vmatprep.subr.bf16.mxu0 0
    %358 = vmatpush2.bf16.msra.mxu0 %v315
    %359 = vmatprep.subr.bf16.mxu0 0
    %360 = vmatpush2.bf16.msra.mxu0 %v314
    %361 = vmatprep.subr.bf16.mxu0 0
    %362 = vmatpush2.bf16.msra.mxu0 %v313
    %363 = vmatprep.subr.bf16.mxu0 0
    %364 = vmatpush2.bf16.msra.mxu0 %v312
    %365 = vmatprep.subr.bf16.mxu0 0
    %366 = vmatpush2.bf16.msra.mxu0 %v311
    %367 = vmatprep.mubr.bf16.mxu0 %v199
    %368 = vmatmul.mubr.bf16.gmra.mxu0 %v198
    %v369 = vpop.f32.mrf.mxu0
    %v370 = vadd.f32 %v237, %v369
    %v371 = vpop.f32.mrf.mxu0
    %v372 = vpop.f32.mrf.mxu0
    %v373 = vadd.f32 %v237, %v372
    %v374 = vpop.f32.mrf.mxu0
    %375 = vdwg.mxu0
    %v376 = vmax.f32 %v370, 0.0
    %v377 = vmax.f32 %v373, 0.0
    %v378 = vpack.c.bf16 %v377, %v376
    %v379 = vld [vmem:[#allocation8] sm:$0xf]
    %v380 = vld [vmem:[#allocation8 + $0x4] sm:$0xf]
    %v381 = vld [vmem:[#allocation8 + $0x8] sm:$0xf]
    %v382 = vld [vmem:[#allocation8 + $0xc] sm:$0xf]
    %v383 = vld [vmem:[#allocation8 + $0x10] sm:$0xf]
    %v384 = vld [vmem:[#allocation8 + $0x14] sm:$0xf]
    %v385 = vld [vmem:[#allocation8 + $0x18] sm:$0xf]
    %v386 = vld [vmem:[#allocation8 + $0x1c] sm:$0xf]
    %v387 = vld [vmem:[#allocation8 + $0x20] sm:$0xf]
    %v388 = vld [vmem:[#allocation8 + $0x24] sm:$0xf]
    %v389 = vld [vmem:[#allocation8 + $0x28] sm:$0xf]
    %v390 = vld [vmem:[#allocation8 + $0x2c] sm:$0xf]
    %v391 = vld [vmem:[#allocation8 + $0x30] sm:$0xf]
    %v392 = vld [vmem:[#allocation8 + $0x34] sm:$0xf]
    %v393 = vld [vmem:[#allocation8 + $0x38] sm:$0xf]
    %v394 = vld [vmem:[#allocation8 + $0x3c] sm:$0xf]
    %v395 = vld [vmem:[%s6] sm:$0x1]
    %v397 = vlaneseq
    %v398 = vshrl.u32 %v397, 7
    %v399 = vsub.s32 0, %v398
    %v400 = vrot.slane %v395, %v399
    %v418 = vunpack.c.l.b16 %v379
    %v419 = vunpack.c.l.b16 %v380
    %v420 = vunpack.c.l.b16 %v381
    %v421 = vunpack.c.l.b16 %v382
    %v422 = vunpack.c.l.b16 %v383
    %v423 = vunpack.c.l.b16 %v384
    %v424 = vunpack.c.l.b16 %v385
    %v425 = vunpack.c.l.b16 %v386
    %v426 = vunpack.c.l.b16 %v387
    %v427 = vunpack.c.l.b16 %v388
    %v428 = vunpack.c.l.b16 %v389
    %v429 = vunpack.c.l.b16 %v390
    %v430 = vunpack.c.l.b16 %v391
    %v431 = vunpack.c.l.b16 %v392
    %v432 = vunpack.c.l.b16 %v393
    %v433 = vunpack.c.l.b16 %v394
    %v434 = vpack.c.b16 %v419, %v418
    %v435 = vpack.c.b16 %v421, %v420
    %v436 = vpack.c.b16 %v423, %v422
    %v437 = vpack.c.b16 %v425, %v424
    %v438 = vpack.c.b16 %v427, %v426
    %v439 = vpack.c.b16 %v429, %v428
    %v440 = vpack.c.b16 %v431, %v430
    %v441 = vpack.c.b16 %v433, %v432
    %450 = vmatprep.subr.bf16.mxu0 0
    %451 = vmatpush1.bf16.msra.mxu0 %v441
    %452 = vmatprep.subr.bf16.mxu0 0
    %453 = vmatpush1.bf16.msra.mxu0 %v440
    %454 = vmatprep.subr.bf16.mxu0 0
    %455 = vmatpush1.bf16.msra.mxu0 %v439
    %456 = vmatprep.subr.bf16.mxu0 0
    %457 = vmatpush1.bf16.msra.mxu0 %v438
    %458 = vmatprep.subr.bf16.mxu0 0
    %459 = vmatpush1.bf16.msra.mxu0 %v437
    %460 = vmatprep.subr.bf16.mxu0 0
    %461 = vmatpush1.bf16.msra.mxu0 %v436
    %462 = vmatprep.subr.bf16.mxu0 0
    %463 = vmatpush1.bf16.msra.mxu0 %v435
    %464 = vmatprep.subr.bf16.mxu0 0
    %465 = vmatpush1.bf16.msra.mxu0 %v434
    %466 = vmatprep.subr.bf16.mxu0 0
    %467 = vmatpush2.bf16.msra.mxu0 0
    %468 = vmatprep.subr.bf16.mxu0 0
    %469 = vmatpush2.bf16.msra.mxu0 0
    %470 = vmatprep.subr.bf16.mxu0 0
    %471 = vmatpush2.bf16.msra.mxu0 0
    %472 = vmatprep.subr.bf16.mxu0 0
    %473 = vmatpush2.bf16.msra.mxu0 0
    %474 = vmatprep.subr.bf16.mxu0 0
    %475 = vmatpush2.bf16.msra.mxu0 0
    %476 = vmatprep.subr.bf16.mxu0 0
    %477 = vmatpush2.bf16.msra.mxu0 0
    %478 = vmatprep.subr.bf16.mxu0 0
    %479 = vmatpush2.bf16.msra.mxu0 0
    %480 = vmatprep.subr.bf16.mxu0 0
    %481 = vmatpush2.bf16.msra.mxu0 0
    %482 = vmatprep.mubr.bf16.mxu0 0
    %483 = vmatmul.mubr.bf16.gmra.mxu0 %v378
    %v484 = vpop.f32.mrf.mxu0
    %v485 = vadd.f32 %v400, %v484
    %v486 = vpop.f32.mrf.mxu0
    %v487 = vpop.f32.mrf.mxu0
    %v488 = vadd.f32 %v400, %v487
    %v489 = vpop.f32.mrf.mxu0
    %490 = vdwg.mxu0
    %491 = vmax.xlane.f32.xlu0 %v485
    %v492 = vpop.xlane.xlu0 %491
    %493 = vmax.xlane.f32.xlu0 %v488
    %v494 = vpop.xlane.xlu0 %493
    %v495 = vsub.f32 %v485, %v492
    %v496 = vsub.f32 %v488, %v494
    %v497 = vmul.f32 %v495, 1.442695
    %v498 = vpow.pop %v497
    %v499 = vmul.f32 %v496, 1.442695
    %v500 = vpow.pop %v499
    %501 = vadd.xlane.f32.xlu0 %v498
    %v502 = vpop.xlane.xlu0 %501
    %503 = vadd.xlane.f32.xlu0 %v500
    %v504 = vpop.xlane.xlu0 %503
    %v505 = vrcp.pop %v502
    %v506 = vmul.f32 %v498, %v505
    %v507 = vrcp.pop %v504
    %v508 = vmul.f32 %v500, %v507
    %vm509 = vcmask 105472
    %510 = vst.msk [vmem:[#allocation10] sm:$0xff] %vm509, %v506
    %511 = vst.msk [vmem:[#allocation10 + $0x8] sm:$0xff] %vm509, %v508
    // Predicated region
    $region46: #{tpu_custom_call.1} parent=1 // pred_check
      _
    $region47: #{tpu_custom_call.1} parent=1 // pred_check_branch
      %513 = sbr.rel (0) target = $region49
    $region48: #{tpu_custom_call.1} parent=1 // pred_region
      %s515 = ssub.s32 256, 256
      %516 = vsyncadd [#allocation4], %s515
      %s517 = sshll.u32 [#allocation10], 4
      %s518 = int_to_ptr.vmem [resolvable:$true] %s517
      %523 = dma.vmem_to_hbm [thread:$0]  %s518, 256, %s7, [#allocation4], 128, 128, 8
    $region49: #{tpu_custom_call.1} parent=1 // pred_fallthru
      _
    // Predicated region
    $region50: #{tpu_custom_call.1} parent=1 // pred_check
      _
    $region51: #{tpu_custom_call.1} parent=1 // pred_check_branch
      %525 = sbr.rel (0) target = $region53
    $region52: #{tpu_custom_call.1} parent=1 // pred_region
      %526 = dma.done [#allocation4], 256
    $region53: #{tpu_custom_call.1} parent=1 // pred_fallthru
      _
    %527 = vsyncpa [#allocation3], 1
    %528 = vsyncpa [#allocation6], 1
    %529 = vsyncpa [#allocation9], 1
    %530 = vsyncpa [#allocation4], 1

</llo_original>
